<compile_context>
chip_gen: v5e
topology: v5e:2x2
jax: 0.10.0
libtpu: 0.0.40
codegen_flags: <defaults>
</compile_context>

<pallas_src>
import math
from functools import partial

import jax
import jax.numpy as jnp
from jax.experimental import pallas as pl
from jax.experimental.pallas import tpu as pltpu


def _mha_kernel(x_ref, wq_ref, bq_ref, wk_ref, bk_ref, wv_ref, bv_ref,
                wp_ref, bp_ref, o_ref, acc_ref, *, scale):
    """Grid = (batch, head).  Accumulates the output projection over heads."""
    h = pl.program_id(1)

    @pl.when(h == 0)
    def _init():
        acc_ref[...] = jnp.zeros_like(acc_ref)

    x = x_ref[0]                                    # (S, H)

    # Per-head q/k/v projections (MXU, f32 accumulation).
    q = jnp.dot(x, wq_ref[0], preferred_element_type=jnp.float32) + bq_ref[0]
    k = jnp.dot(x, wk_ref[0], preferred_element_type=jnp.float32) + bk_ref[0]
    v = jnp.dot(x, wv_ref[0], preferred_element_type=jnp.float32) + bv_ref[0]

    # Scaled scores + causal mask.
    s = jnp.dot(q, k.T, preferred_element_type=jnp.float32) * scale   # (S, S)
    seq = s.shape[0]
    row = jax.lax.broadcasted_iota(jnp.int32, (seq, seq), 0)
    col = jax.lax.broadcasted_iota(jnp.int32, (seq, seq), 1)
    s = jnp.where(col <= row, s, -1e30)

    # Numerically stable softmax in f32.
    s = s - jnp.max(s, axis=-1, keepdims=True)
    e = jnp.exp(s)
    p = e / jnp.sum(e, axis=-1, keepdims=True)

    # TODO(synk): attention dropout and output dropout omitted — identity in eval mode.

    attn = jnp.dot(p.astype(v.dtype), v,
                   preferred_element_type=jnp.float32)                # (S, hs)

    # Accumulate this head's slice of the output projection.
    acc_ref[...] += jnp.dot(attn.astype(wp_ref.dtype), wp_ref[0],
                            preferred_element_type=jnp.float32)       # (S, H)

    @pl.when(h == pl.num_programs(1) - 1)
    def _finalize():
        o_ref[0] = (acc_ref[...] + bp_ref[...]).astype(o_ref.dtype)


def mha_forward(x, wq, bq, wk, bk, wv, bv, wp, bp):
    """Fused causal multi-head attention.

    x : (B, S, H)
    wq/wk/wv : (n_head, H, head_size)   per-head projection weights (in, out)
    bq/bk/bv : (n_head, 1, head_size)
    wp : (n_head, head_size, H)         output projection, split along the concat dim
    bp : (1, H)
    """
    B, S, H = x.shape
    n_head, _, hs = wq.shape
    scale = 1.0 / math.sqrt(hs)

    itemsize = jnp.dtype(x.dtype).itemsize
    flops = 2 * B * n_head * (3 * S * H * hs + 2 * S * S * hs + S * hs * H)
    transcendentals = B * n_head * S * S
    bytes_accessed = itemsize * (2 * B * S * H
                                 + B * n_head * (3 * H * hs + hs * H) + H)

    out = pl.pallas_call(
        partial(_mha_kernel, scale=scale),
        out_shape=jax.ShapeDtypeStruct((B, S, H), x.dtype),
        grid_spec=pltpu.PrefetchScalarGridSpec(
            num_scalar_prefetch=0,
            grid=(B, n_head),
            in_specs=[
                pl.BlockSpec((1, S, H), lambda b, h: (b, 0, 0)),    # x
                pl.BlockSpec((1, H, hs), lambda b, h: (h, 0, 0)),   # wq
                pl.BlockSpec((1, 1, hs), lambda b, h: (h, 0, 0)),   # bq
                pl.BlockSpec((1, H, hs), lambda b, h: (h, 0, 0)),   # wk
                pl.BlockSpec((1, 1, hs), lambda b, h: (h, 0, 0)),   # bk
                pl.BlockSpec((1, H, hs), lambda b, h: (h, 0, 0)),   # wv
                pl.BlockSpec((1, 1, hs), lambda b, h: (h, 0, 0)),   # bv
                pl.BlockSpec((1, hs, H), lambda b, h: (h, 0, 0)),   # wp
                pl.BlockSpec((1, H), lambda b, h: (0, 0)),          # bp
            ],
            out_specs=pl.BlockSpec((1, S, H), lambda b, h: (b, 0, 0)),
            scratch_shapes=[pltpu.VMEM((S, H), jnp.float32)],
        ),
        compiler_params=pltpu.CompilerParams(
            dimension_semantics=("parallel", "arbitrary")),
        cost_estimate=pl.CostEstimate(flops=int(flops),
                                      transcendentals=int(transcendentals),
                                      bytes_accessed=int(bytes_accessed)),
    )(x, wq, bq, wk, bk, wv, bv, wp, bp)
    return out


def init_params(key, hidden_dim, n_head):
    """Deterministic init matching nn.Linear's uniform(-1/sqrt(fan_in), ...) bounds."""
    hs = hidden_dim // n_head
    keys = jax.random.split(key, 8)
    bound = 1.0 / math.sqrt(hidden_dim)        # fan_in = hidden_dim for all layers
    wq = jax.random.uniform(keys[0], (n_head, hidden_dim, hs), jnp.float32, -bound, bound)
    bq = jax.random.uniform(keys[1], (n_head, 1, hs), jnp.float32, -bound, bound)
    wk = jax.random.uniform(keys[2], (n_head, hidden_dim, hs), jnp.float32, -bound, bound)
    bk = jax.random.uniform(keys[3], (n_head, 1, hs), jnp.float32, -bound, bound)
    wv = jax.random.uniform(keys[4], (n_head, hidden_dim, hs), jnp.float32, -bound, bound)
    bv = jax.random.uniform(keys[5], (n_head, 1, hs), jnp.float32, -bound, bound)
    wp = jax.random.uniform(keys[6], (n_head, hs, hidden_dim), jnp.float32, -bound, bound)
    bp = jax.random.uniform(keys[7], (1, hidden_dim), jnp.float32, -bound, bound)
    return wq, bq, wk, bk, wv, bv, wp, bp


def mha_reference(x, wq, bq, wk, bk, wv, bv, wp, bp):
    """Pure-JAX reference of the intended MultiHeadAttention forward (eval mode)."""
    B, S, H = x.shape
    n_head, _, hs = wq.shape
    scale = 1.0 / math.sqrt(hs)
    mask = jnp.tril(jnp.ones((S, S), dtype=bool))
    heads = []
    for h in range(n_head):
        q = x @ wq[h] + bq[h]
        k = x @ wk[h] + bk[h]
        v = x @ wv[h] + bv[h]
        s = jnp.einsum("bqd,bkd->bqk", q, k) * scale
        s = jnp.where(mask, s, -1e30)
        p = jax.nn.softmax(s, axis=-1)
        heads.append(jnp.einsum("bqk,bkd->bqd", p, v))
    concat = jnp.concatenate(heads, axis=-1)               # (B, S, H)
    return concat @ wp.reshape(n_head * hs, H) + bp


if __name__ == "__main__":
    batch, seq, hidden, n_head = 2, 8, 32, 4

    key = jax.random.PRNGKey(0)
    kx, kp = jax.random.split(key)
    x = jax.random.normal(kx, (batch, seq, hidden), dtype=jnp.float32)
    params = init_params(kp, hidden, n_head)

    y = mha_forward(x, *params)
    jax.block_until_ready(y)

    y_ref = mha_reference(x, *params)
    assert y.shape == (batch, seq, hidden)
    assert jnp.allclose(y, y_ref, atol=1e-4, rtol=1e-4), "mismatch vs reference"

    print("KERNEL_OK")
</pallas_src>

<mosaic_0001>
module attributes {stable_mosaic.version = 11 : i64} {
  func.func @_mha_kernel(%arg0: i32, %arg1: i32, %arg2: memref<1x8x32xf32, #tpu.memory_space<vmem>>, %arg3: memref<1x32x8xf32, #tpu.memory_space<vmem>>, %arg4: memref<1x1x8xf32, #tpu.memory_space<vmem>>, %arg5: memref<1x32x8xf32, #tpu.memory_space<vmem>>, %arg6: memref<1x1x8xf32, #tpu.memory_space<vmem>>, %arg7: memref<1x32x8xf32, #tpu.memory_space<vmem>>, %arg8: memref<1x1x8xf32, #tpu.memory_space<vmem>>, %arg9: memref<1x8x32xf32, #tpu.memory_space<vmem>>, %arg10: memref<1x32xf32, #tpu.memory_space<vmem>>, %arg11: memref<1x8x32xf32, #tpu.memory_space<vmem>>, %arg12: memref<8x32xf32, #tpu.memory_space<vmem>>) attributes {dimension_semantics = [#tpu.dimension_semantics<parallel>, #tpu.dimension_semantics<arbitrary>], iteration_bounds = array<i64: 2, 4>, scalar_prefetch = 0 : i64, scratch_operands = 1 : i64, tpu.core_type = #tpu.core_type<tc>, window_params = [{transform_indices = @transform_0, window_bounds = array<i64: 1, 8, 32>}, {transform_indices = @transform_1, window_bounds = array<i64: 1, 32, 8>}, {transform_indices = @transform_2, window_bounds = array<i64: 1, 1, 8>}, {transform_indices = @transform_3, window_bounds = array<i64: 1, 32, 8>}, {transform_indices = @transform_4, window_bounds = array<i64: 1, 1, 8>}, {transform_indices = @transform_5, window_bounds = array<i64: 1, 32, 8>}, {transform_indices = @transform_6, window_bounds = array<i64: 1, 1, 8>}, {transform_indices = @transform_7, window_bounds = array<i64: 1, 8, 32>}, {pipeline_mode = #tpu.pipeline_mode<synchronous>, transform_indices = @transform_8, window_bounds = array<i64: 1, 32>}, {transform_indices = @transform_9, window_bounds = array<i64: 1, 8, 32>}]} {
    %c0_i32 = arith.constant 0 : i32
    %0 = arith.cmpi eq, %arg1, %c0_i32 : i32
    %1 = arith.extui %0 : i1 to i32
    %c0_i32_0 = arith.constant 0 : i32
    %2 = arith.cmpi ne, %1, %c0_i32_0 : i32
    scf.if %2 {
      %cst_38 = arith.constant 0.000000e+00 : f32
      %54 = vector.broadcast %cst_38 : f32 to vector<8x32xf32>
      %c0_39 = arith.constant 0 : index
      %c0_40 = arith.constant 0 : index
      %55 = vector.load %arg12[%c0_39, %c0_40] : memref<8x32xf32, #tpu.memory_space<vmem>>, vector<8x32xf32>
      tpu.vector_store %arg12[%c0_39, %c0_40], %54 {strides = array<i32>} : memref<8x32xf32, #tpu.memory_space<vmem>>, vector<8x32xf32>,
    } else {
    }
    %c0 = arith.constant 0 : index
    %c0_1 = arith.constant 0 : index
    %c0_2 = arith.constant 0 : index
    %3 = vector.load %arg2[%c0, %c0_1, %c0_2] : memref<1x8x32xf32, #tpu.memory_space<vmem>>, vector<1x8x32xf32>
    %4 = vector.shape_cast %3 : vector<1x8x32xf32> to vector<8x32xf32>
    %c0_3 = arith.constant 0 : index
    %c0_4 = arith.constant 0 : index
    %c0_5 = arith.constant 0 : index
    %5 = vector.load %arg3[%c0_3, %c0_4, %c0_5] : memref<1x32x8xf32, #tpu.memory_space<vmem>>, vector<1x32x8xf32>
    %6 = vector.shape_cast %5 : vector<1x32x8xf32> to vector<32x8xf32>
    %cst = arith.constant dense<0.000000e+00> : vector<8x8xf32>
    %7 = tpu.matmul %4, %6, %cst {dimension_numbers = #tpu.dot_dimension_numbers<[1], [0], [0], [1], [0, 0, 1, 1], [], []>} : vector<8x32xf32>, vector<32x8xf32>, vector<8x8xf32> -> vector<8x8xf32>
    %c0_6 = arith.constant 0 : index
    %c0_7 = arith.constant 0 : index
    %c0_8 = arith.constant 0 : index
    %8 = vector.load %arg4[%c0_6, %c0_7, %c0_8] : memref<1x1x8xf32, #tpu.memory_space<vmem>>, vector<1x1x8xf32>
    %9 = vector.shape_cast %8 : vector<1x1x8xf32> to vector<1x8xf32>
    %10 = vector.broadcast %9 : vector<1x8xf32> to vector<8x8xf32>
    %11 = arith.addf %7, %10 : vector<8x8xf32>
    %c0_9 = arith.constant 0 : index
    %c0_10 = arith.constant 0 : index
    %c0_11 = arith.constant 0 : index
    %12 = vector.load %arg5[%c0_9, %c0_10, %c0_11] : memref<1x32x8xf32, #tpu.memory_space<vmem>>, vector<1x32x8xf32>
    %13 = vector.shape_cast %12 : vector<1x32x8xf32> to vector<32x8xf32>
    %cst_12 = arith.constant dense<0.000000e+00> : vector<8x8xf32>
    %14 = tpu.matmul %4, %13, %cst_12 {dimension_numbers = #tpu.dot_dimension_numbers<[1], [0], [0], [1], [0, 0, 1, 1], [], []>} : vector<8x32xf32>, vector<32x8xf32>, vector<8x8xf32> -> vector<8x8xf32>
    %c0_13 = arith.constant 0 : index
    %c0_14 = arith.constant 0 : index
    %c0_15 = arith.constant 0 : index
    %15 = vector.load %arg6[%c0_13, %c0_14, %c0_15] : memref<1x1x8xf32, #tpu.memory_space<vmem>>, vector<1x1x8xf32>
    %16 = vector.shape_cast %15 : vector<1x1x8xf32> to vector<1x8xf32>
    %17 = vector.broadcast %16 : vector<1x8xf32> to vector<8x8xf32>
    %18 = arith.addf %14, %17 : vector<8x8xf32>
    %c0_16 = arith.constant 0 : index
    %c0_17 = arith.constant 0 : index
    %c0_18 = arith.constant 0 : index
    %19 = vector.load %arg7[%c0_16, %c0_17, %c0_18] : memref<1x32x8xf32, #tpu.memory_space<vmem>>, vector<1x32x8xf32>
    %20 = vector.shape_cast %19 : vector<1x32x8xf32> to vector<32x8xf32>
    %cst_19 = arith.constant dense<0.000000e+00> : vector<8x8xf32>
    %21 = tpu.matmul %4, %20, %cst_19 {dimension_numbers = #tpu.dot_dimension_numbers<[1], [0], [0], [1], [0, 0, 1, 1], [], []>} : vector<8x32xf32>, vector<32x8xf32>, vector<8x8xf32> -> vector<8x8xf32>
    %c0_20 = arith.constant 0 : index
    %c0_21 = arith.constant 0 : index
    %c0_22 = arith.constant 0 : index
    %22 = vector.load %arg8[%c0_20, %c0_21, %c0_22] : memref<1x1x8xf32, #tpu.memory_space<vmem>>, vector<1x1x8xf32>
    %23 = vector.shape_cast %22 : vector<1x1x8xf32> to vector<1x8xf32>
    %24 = vector.broadcast %23 : vector<1x8xf32> to vector<8x8xf32>
    %25 = arith.addf %21, %24 : vector<8x8xf32>
    %26 = tpu.transpose %18, [1, 0] : vector<8x8xf32> -> vector<8x8xf32>
    %cst_23 = arith.constant dense<0.000000e+00> : vector<8x8xf32>
    %27 = tpu.matmul %11, %26, %cst_23 {dimension_numbers = #tpu.dot_dimension_numbers<[1], [0], [0], [1], [0, 0, 1, 1], [], []>} : vector<8x8xf32>, vector<8x8xf32>, vector<8x8xf32> -> vector<8x8xf32>
    %cst_24 = arith.constant 0.353553385 : f32
    %28 = vector.broadcast %cst_24 : f32 to vector<8x8xf32>
    %29 = arith.mulf %27, %28 : vector<8x8xf32>
    %30 = tpu.iota {dimensions = array<i32: 0>} : vector<8x8xi32>
    %31 = tpu.iota {dimensions = array<i32: 1>} : vector<8x8xi32>
    %32 = arith.cmpi sle, %31, %30 : vector<8x8xi32>
    %cst_25 = arith.constant -1.000000e+30 : f32
    %33 = vector.broadcast %cst_25 : f32 to vector<8x8xf32>
    %34 = arith.select %32, %29, %33 : vector<8x8xi1>, vector<8x8xf32>
    %cst_26 = arith.constant dense<0xFF800000> : vector<8xf32>
    %35 = vector.multi_reduction <maximumf>, %34, %cst_26 [1] : vector<8x8xf32> to vector<8xf32>
    %36 = vector.shape_cast %35 : vector<8xf32> to vector<8x1xf32>
    %37 = vector.broadcast %36 : vector<8x1xf32> to vector<8x8xf32>
    %38 = arith.subf %34, %37 : vector<8x8xf32>
    %39 = math.exp %38 : vector<8x8xf32>
    %cst_27 = arith.constant dense<0.000000e+00> : vector<8xf32>
    %40 = vector.multi_reduction <add>, %39, %cst_27 [1] : vector<8x8xf32> to vector<8xf32>
    %41 = vector.shape_cast %40 : vector<8xf32> to vector<8x1xf32>
    %42 = vector.broadcast %41 : vector<8x1xf32> to vector<8x8xf32>
    %43 = arith.divf %39, %42 : vector<8x8xf32>
    %cst_28 = arith.constant dense<0.000000e+00> : vector<8x8xf32>
    %44 = tpu.matmul %43, %25, %cst_28 {dimension_numbers = #tpu.dot_dimension_numbers<[1], [0], [0], [1], [0, 0, 1, 1], [], []>} : vector<8x8xf32>, vector<8x8xf32>, vector<8x8xf32> -> vector<8x8xf32>
    %c0_29 = arith.constant 0 : index
    %c0_30 = arith.constant 0 : index
    %45 = vector.load %arg12[%c0_29, %c0_30] : memref<8x32xf32, #tpu.memory_space<vmem>>, vector<8x32xf32>
    %c0_31 = arith.constant 0 : index
    %c0_32 = arith.constant 0 : index
    %c0_33 = arith.constant 0 : index
    %46 = vector.load %arg9[%c0_31, %c0_32, %c0_33] : memref<1x8x32xf32, #tpu.memory_space<vmem>>, vector<1x8x32xf32>
    %47 = vector.shape_cast %46 : vector<1x8x32xf32> to vector<8x32xf32>
    %cst_34 = arith.constant dense<0.000000e+00> : vector<8x32xf32>
    %48 = tpu.matmul %44, %47, %cst_34 {dimension_numbers = #tpu.dot_dimension_numbers<[1], [0], [0], [1], [0, 0, 1, 1], [], []>} : vector<8x8xf32>, vector<8x32xf32>, vector<8x32xf32> -> vector<8x32xf32>
    %49 = arith.addf %45, %48 : vector<8x32xf32>
    %c0_35 = arith.constant 0 : index
    %c0_36 = arith.constant 0 : index
    %50 = vector.load %arg12[%c0_35, %c0_36] : memref<8x32xf32, #tpu.memory_space<vmem>>, vector<8x32xf32>
    tpu.vector_store %arg12[%c0_35, %c0_36], %49 {strides = array<i32>} : memref<8x32xf32, #tpu.memory_space<vmem>>, vector<8x32xf32>,
    %c3_i32 = arith.constant 3 : i32
    %51 = arith.cmpi eq, %arg1, %c3_i32 : i32
    %52 = arith.extui %51 : i1 to i32
    %c0_i32_37 = arith.constant 0 : i32
    %53 = arith.cmpi ne, %52, %c0_i32_37 : i32
    scf.if %53 {
      %c0_38 = arith.constant 0 : index
      %c0_39 = arith.constant 0 : index
      %54 = vector.load %arg12[%c0_38, %c0_39] : memref<8x32xf32, #tpu.memory_space<vmem>>, vector<8x32xf32>
      %c0_40 = arith.constant 0 : index
      %c0_41 = arith.constant 0 : index
      %55 = vector.load %arg10[%c0_40, %c0_41] : memref<1x32xf32, #tpu.memory_space<vmem>>, vector<1x32xf32>
      %56 = vector.broadcast %55 : vector<1x32xf32> to vector<8x32xf32>
      %57 = arith.addf %54, %56 : vector<8x32xf32>
      %c0_42 = arith.constant 0 : index
      %c0_43 = arith.constant 0 : index
      %c0_44 = arith.constant 0 : index
      %58 = vector.load %arg11[%c0_42, %c0_43, %c0_44] : memref<1x8x32xf32, #tpu.memory_space<vmem>>, vector<1x8x32xf32>
      %59 = vector.shape_cast %58 : vector<1x8x32xf32> to vector<8x32xf32>
      %60 = vector.shape_cast %57 : vector<8x32xf32> to vector<1x8x32xf32>
      tpu.vector_store %arg11[%c0_42, %c0_43, %c0_44], %60 {strides = array<i32>} : memref<1x8x32xf32, #tpu.memory_space<vmem>>, vector<1x8x32xf32>,
    } else {
    }
    return
  }
  func.func @transform_0(%arg0: i32, %arg1: i32) -> (i32, i32, i32) {
    %c0_i32 = arith.constant 0 : i32
    %c0_i32_0 = arith.constant 0 : i32
    %c0_i32_1 = arith.constant 0 : i32
    return %arg0, %c0_i32, %c0_i32_0 : i32, i32, i32
  }
  func.func @transform_1(%arg0: i32, %arg1: i32) -> (i32, i32, i32) {
    %c0_i32 = arith.constant 0 : i32
    %c0_i32_0 = arith.constant 0 : i32
    %c0_i32_1 = arith.constant 0 : i32
    return %arg1, %c0_i32, %c0_i32_0 : i32, i32, i32
  }
  func.func @transform_2(%arg0: i32, %arg1: i32) -> (i32, i32, i32) {
    %c0_i32 = arith.constant 0 : i32
    %c0_i32_0 = arith.constant 0 : i32
    %c0_i32_1 = arith.constant 0 : i32
    return %arg1, %c0_i32, %c0_i32_0 : i32, i32, i32
  }
  func.func @transform_3(%arg0: i32, %arg1: i32) -> (i32, i32, i32) {
    %c0_i32 = arith.constant 0 : i32
    %c0_i32_0 = arith.constant 0 : i32
    %c0_i32_1 = arith.constant 0 : i32
    return %arg1, %c0_i32, %c0_i32_0 : i32, i32, i32
  }
  func.func @transform_4(%arg0: i32, %arg1: i32) -> (i32, i32, i32) {
    %c0_i32 = arith.constant 0 : i32
    %c0_i32_0 = arith.constant 0 : i32
    %c0_i32_1 = arith.constant 0 : i32
    return %arg1, %c0_i32, %c0_i32_0 : i32, i32, i32
  }
  func.func @transform_5(%arg0: i32, %arg1: i32) -> (i32, i32, i32) {
    %c0_i32 = arith.constant 0 : i32
    %c0_i32_0 = arith.constant 0 : i32
    %c0_i32_1 = arith.constant 0 : i32
    return %arg1, %c0_i32, %c0_i32_0 : i32, i32, i32
  }
  func.func @transform_6(%arg0: i32, %arg1: i32) -> (i32, i32, i32) {
    %c0_i32 = arith.constant 0 : i32
    %c0_i32_0 = arith.constant 0 : i32
    %c0_i32_1 = arith.constant 0 : i32
    return %arg1, %c0_i32, %c0_i32_0 : i32, i32, i32
  }
  func.func @transform_7(%arg0: i32, %arg1: i32) -> (i32, i32, i32) {
    %c0_i32 = arith.constant 0 : i32
    %c0_i32_0 = arith.constant 0 : i32
    %c0_i32_1 = arith.constant 0 : i32
    return %arg1, %c0_i32, %c0_i32_0 : i32, i32, i32
  }
  func.func @transform_8(%arg0: i32, %arg1: i32) -> (i32, i32) {
    %c0_i32 = arith.constant 0 : i32
    %c0_i32_0 = arith.constant 0 : i32
    %c0_i32_1 = arith.constant 0 : i32
    return %c0_i32, %c0_i32_0 : i32, i32
  }
  func.func @transform_9(%arg0: i32, %arg1: i32) -> (i32, i32, i32) {
    %c0_i32 = arith.constant 0 : i32
    %c0_i32_0 = arith.constant 0 : i32
    %c0_i32_1 = arith.constant 0 : i32
    return %arg0, %c0_i32, %c0_i32_0 : i32, i32, i32
  }
}

</mosaic_0001>

<llo_original>
// kernel: tpu_custom_call.1
$region0: #{tpu_custom_call.1}
  #allocation0 [shape = 'u32[]', space=smem, size = 0x4, offset = 0x4, fixed_abs, tag = 'smem constant byte address 0x4 - core index']
  #allocation1 [shape = 'u32[72,128]{1,0:T(1,128)}', space=vmem, size = 0x9000, scoped, tag = 'internal scratch']
  #allocation2 [shape = 'f32[8,32]{1,0:T(8,128)}', space=vmem, size = 0x1000, scoped, tag = 'scratch operand']
  %s0 = inlined_call_operand.vmem [shape: f32[2,8,32], index: 0, kind: input, shape index: {}]
  %s1 = inlined_call_operand.vmem [shape: f32[4,32,8], index: 1, kind: input, shape index: {}]
  %s2 = inlined_call_operand.vmem [shape: f32[4,1,8], index: 2, kind: input, shape index: {}]
  %s3 = inlined_call_operand.vmem [shape: f32[4,32,8], index: 3, kind: input, shape index: {}]
  %s4 = inlined_call_operand.vmem [shape: f32[4,1,8], index: 4, kind: input, shape index: {}]
  %s5 = inlined_call_operand.vmem [shape: f32[4,32,8], index: 5, kind: input, shape index: {}]
  %s6 = inlined_call_operand.vmem [shape: f32[4,1,8], index: 6, kind: input, shape index: {}]
  %s7 = inlined_call_operand.vmem [shape: f32[4,8,32], index: 7, kind: input, shape index: {}]
  %s8 = inlined_call_operand.vmem [shape: f32[1,32], index: 8, kind: input, shape index: {}]
  %s9 = inlined_call_operand.hbm [shape: f32[2,8,32], index: 9, kind: output, shape index: {}]
  %s10 = sld [smem:[#allocation0]]
  $region77: #{tpu_custom_call.1} parent=0
    _
  %s12 = ssub.s32 1, %s10
  %s13 = scalar_select 0, %s12, %s10
  $region1: #{tpu_custom_call.1} parent=0
    #allocation3 [shape = 'u8[8192]{0}', space=vmem, size = 0x2000, scoped, tag = 'output window, operand 0']
    #allocation4 [shape = 's32[2]{0}', space=sflag, size = 0x8, scoped, tag = 'scoped memory for tpu_custom_call.1']
    %14 = vsyncpa [#allocation4], 0
    %s15 = scalar_lea.sflag [#allocation4], 1
    %16 = vsyncpa %s15, 0
    loop: start=0, step=1, limit=10
    $region2: #{tpu_custom_call.1} parent=1 // loop_pre_header
      _
    $region3: #{tpu_custom_call.1} parent=1 // loop_header
      %s18 = sphi 0, %s22
      %p19 = scmp.ge.s32.totalorder %s18, 10
      %s25 = sphi 0, %s37
      %s26 = sphi 0, %s33
      %s27 = sphi 0, %s25
      %s28 = sphi 0, %s26
      %s29 = sphi 0, %s27
      %s30 = sphi 0, %s28
      %s40 = sphi 0, %s42
      %s43 = sphi 0, %s40
      %s44 = sphi 0, %s43
      %s60 = sphi 0, %s44
      %s66 = sphi 0, %s68
      %s69 = sphi 0, %s66
      %s70 = sphi 0, %s69
      %s86 = sphi 0, %s70
      %s92 = sphi 0, %s94
      %s95 = sphi 0, %s92
      %s96 = sphi 0, %s95
      %s112 = sphi 0, %s96
      %s118 = sphi 0, %s120
      %s121 = sphi 0, %s118
      %s122 = sphi 0, %s121
      %s138 = sphi 0, %s122
      %s144 = sphi 0, %s146
      %s147 = sphi 0, %s144
      %s148 = sphi 0, %s147
      %s164 = sphi 0, %s148
      %s170 = sphi 0, %s172
      %s173 = sphi 0, %s170
      %s174 = sphi 0, %s173
      %s190 = sphi 0, %s174
      %s196 = sphi 0, %s198
      %s199 = sphi 0, %s196
      %s200 = sphi 0, %s199
      %s216 = sphi 0, %s200
      %s222 = sphi 0, %s224
      %s225 = sphi 0, %s222
      %s226 = sphi 0, %s225
      %s242 = sphi 0, %s226
      %s246 = sphi 0, %s246
      %s248 = sphi 0, %s246
      %s249 = sphi 0, %s248
      %s263 = sphi 0, %s249
      %s269 = sphi 0, %s271
      %s272 = sphi 0, %s269
      %s273 = sphi 0, %s272
      %s289 = sphi 0, %s273
    $region4: #{tpu_custom_call.1} parent=1 // loop_header_branch
      %21 = sbr.rel (%p19) target = $region8
    $region5: #{tpu_custom_call.1} parent=1 // loop_body
      %s23 = ssub.s32 %s18, 1
      %s24 = ssub.s32 %s18, 2
      %s31 = sadd.s32 1, %s26
      %p32 = scmp.ge.s32.totalorder %s31, 4
      %s33 = scalar_select %p32, 0, %s31
      %s34 = sadd.s32 1, %s25
      %s35 = scalar_select %p32, %s34, %s25
      %p36 = scmp.ge.s32.totalorder %s35, 2
      %s37 = scalar_select %p36, 0, %s35
      %s38 = ssub.s32 %s25, %s37
      %p39 = scmp.eq.s32.totalorder %s38, 0
      %s41 = sadd.s32 %s40, 1
      %s42 = scalar_select %p39, %s40, %s41
      %p45 = pneg %p39
      %p46 = scmp.eq.s32.totalorder %s18, 7
      %p47 = por %p45, %p46
      %p48 = scmp.ne.s32.totalorder %s40, %s43
      %p49 = scmp.eq.s32.totalorder %s18, 0
      %p50 = por %p48, %p49
      %p51 = scmp.ne.s32.totalorder %s40, %s43
      %p52 = scmp.eq.s32.totalorder %s23, 7
      %p53 = por %p51, %p52
      %p54 = scmp.ne.s32.totalorder %s43, %s44
      %p55 = scmp.eq.s32.totalorder %s23, 0
      %p56 = por %p54, %p55
      %p57 = scmp.ne.s32.totalorder %s43, %s44
      %p58 = scmp.eq.s32.totalorder %s24, 7
      %p59 = por %p57, %p58
      %p61 = scmp.ne.s32.totalorder %s44, %s60
      %p62 = scmp.eq.s32.totalorder %s24, 0
      %p63 = por %p61, %p62
      %s64 = ssub.s32 %s26, %s33
      %p65 = scmp.eq.s32.totalorder %s64, 0
      %s67 = sadd.s32 %s66, 1
      %s68 = scalar_select %p65, %s66, %s67
      %p71 = pneg %p65
      %p72 = scmp.eq.s32.totalorder %s18, 7
      %p73 = por %p71, %p72
      %p74 = scmp.ne.s32.totalorder %s66, %s69
      %p75 = scmp.eq.s32.totalorder %s18, 0
      %p76 = por %p74, %p75
      %p77 = scmp.ne.s32.totalorder %s66, %s69
      %p78 = scmp.eq.s32.totalorder %s23, 7
      %p79 = por %p77, %p78
      %p80 = scmp.ne.s32.totalorder %s69, %s70
      %p81 = scmp.eq.s32.totalorder %s23, 0
      %p82 = por %p80, %p81
      %p83 = scmp.ne.s32.totalorder %s69, %s70
      %p84 = scmp.eq.s32.totalorder %s24, 7
      %p85 = por %p83, %p84
      %p87 = scmp.ne.s32.totalorder %s70, %s86
      %p88 = scmp.eq.s32.totalorder %s24, 0
      %p89 = por %p87, %p88
      %s90 = ssub.s32 %s26, %s33
      %p91 = scmp.eq.s32.totalorder %s90, 0
      %s93 = sadd.s32 %s92, 1
      %s94 = scalar_select %p91, %s92, %s93
      %p97 = pneg %p91
      %p98 = scmp.eq.s32.totalorder %s18, 7
      %p99 = por %p97, %p98
      %p100 = scmp.ne.s32.totalorder %s92, %s95
      %p101 = scmp.eq.s32.totalorder %s18, 0
      %p102 = por %p100, %p101
      %p103 = scmp.ne.s32.totalorder %s92, %s95
      %p104 = scmp.eq.s32.totalorder %s23, 7
      %p105 = por %p103, %p104
      %p106 = scmp.ne.s32.totalorder %s95, %s96
      %p107 = scmp.eq.s32.totalorder %s23, 0
      %p108 = por %p106, %p107
      %p109 = scmp.ne.s32.totalorder %s95, %s96
      %p110 = scmp.eq.s32.totalorder %s24, 7
      %p111 = por %p109, %p110
      %p113 = scmp.ne.s32.totalorder %s96, %s112
      %p114 = scmp.eq.s32.totalorder %s24, 0
      %p115 = por %p113, %p114
      %s116 = ssub.s32 %s26, %s33
      %p117 = scmp.eq.s32.totalorder %s116, 0
      %s119 = sadd.s32 %s118, 1
      %s120 = scalar_select %p117, %s118, %s119
      %p123 = pneg %p117
      %p124 = scmp.eq.s32.totalorder %s18, 7
      %p125 = por %p123, %p124
      %p126 = scmp.ne.s32.totalorder %s118, %s121
      %p127 = scmp.eq.s32.totalorder %s18, 0
      %p128 = por %p126, %p127
      %p129 = scmp.ne.s32.totalorder %s118, %s121
      %p130 = scmp.eq.s32.totalorder %s23, 7
      %p131 = por %p129, %p130
      %p132 = scmp.ne.s32.totalorder %s121, %s122
      %p133 = scmp.eq.s32.totalorder %s23, 0
      %p134 = por %p132, %p133
      %p135 = scmp.ne.s32.totalorder %s121, %s122
      %p136 = scmp.eq.s32.totalorder %s24, 7
      %p137 = por %p135, %p136
      %p139 = scmp.ne.s32.totalorder %s122, %s138
      %p140 = scmp.eq.s32.totalorder %s24, 0
      %p141 = por %p139, %p140
      %s142 = ssub.s32 %s26, %s33
      %p143 = scmp.eq.s32.totalorder %s142, 0
      %s145 = sadd.s32 %s144, 1
      %s146 = scalar_select %p143, %s144, %s145
      %p149 = pneg %p143
      %p150 = scmp.eq.s32.totalorder %s18, 7
      %p151 = por %p149, %p150
      %p152 = scmp.ne.s32.totalorder %s144, %s147
      %p153 = scmp.eq.s32.totalorder %s18, 0
      %p154 = por %p152, %p153
      %p155 = scmp.ne.s32.totalorder %s144, %s147
      %p156 = scmp.eq.s32.totalorder %s23, 7
      %p157 = por %p155, %p156
      %p158 = scmp.ne.s32.totalorder %s147, %s148
      %p159 = scmp.eq.s32.totalorder %s23, 0
      %p160 = por %p158, %p159
      %p161 = scmp.ne.s32.totalorder %s147, %s148
      %p162 = scmp.eq.s32.totalorder %s24, 7
      %p163 = por %p161, %p162
      %p165 = scmp.ne.s32.totalorder %s148, %s164
      %p166 = scmp.eq.s32.totalorder %s24, 0
      %p167 = por %p165, %p166
      %s168 = ssub.s32 %s26, %s33
      %p169 = scmp.eq.s32.totalorder %s168, 0
      %s171 = sadd.s32 %s170, 1
      %s172 = scalar_select %p169, %s170, %s171
      %p175 = pneg %p169
      %p176 = scmp.eq.s32.totalorder %s18, 7
      %p177 = por %p175, %p176
      %p178 = scmp.ne.s32.totalorder %s170, %s173
      %p179 = scmp.eq.s32.totalorder %s18, 0
      %p180 = por %p178, %p179
      %p181 = scmp.ne.s32.totalorder %s170, %s173
      %p182 = scmp.eq.s32.totalorder %s23, 7
      %p183 = por %p181, %p182
      %p184 = scmp.ne.s32.totalorder %s173, %s174
      %p185 = scmp.eq.s32.totalorder %s23, 0
      %p186 = por %p184, %p185
      %p187 = scmp.ne.s32.totalorder %s173, %s174
      %p188 = scmp.eq.s32.totalorder %s24, 7
      %p189 = por %p187, %p188
      %p191 = scmp.ne.s32.totalorder %s174, %s190
      %p192 = scmp.eq.s32.totalorder %s24, 0
      %p193 = por %p191, %p192
      %s194 = ssub.s32 %s26, %s33
      %p195 = scmp.eq.s32.totalorder %s194, 0
      %s197 = sadd.s32 %s196, 1
      %s198 = scalar_select %p195, %s196, %s197
      %p201 = pneg %p195
      %p202 = scmp.eq.s32.totalorder %s18, 7
      %p203 = por %p201, %p202
      %p204 = scmp.ne.s32.totalorder %s196, %s199
      %p205 = scmp.eq.s32.totalorder %s18, 0
      %p206 = por %p204, %p205
      %p207 = scmp.ne.s32.totalorder %s196, %s199
      %p208 = scmp.eq.s32.totalorder %s23, 7
      %p209 = por %p207, %p208
      %p210 = scmp.ne.s32.totalorder %s199, %s200
      %p211 = scmp.eq.s32.totalorder %s23, 0
      %p212 = por %p210, %p211
      %p213 = scmp.ne.s32.totalorder %s199, %s200
      %p214 = scmp.eq.s32.totalorder %s24, 7
      %p215 = por %p213, %p214
      %p217 = scmp.ne.s32.totalorder %s200, %s216
      %p218 = scmp.eq.s32.totalorder %s24, 0
      %p219 = por %p217, %p218
      %s220 = ssub.s32 %s26, %s33
      %p221 = scmp.eq.s32.totalorder %s220, 0
      %s223 = sadd.s32 %s222, 1
      %s224 = scalar_select %p221, %s222, %s223
      %p227 = pneg %p221
      %p228 = scmp.eq.s32.totalorder %s18, 7
      %p229 = por %p227, %p228
      %p230 = scmp.ne.s32.totalorder %s222, %s225
      %p231 = scmp.eq.s32.totalorder %s18, 0
      %p232 = por %p230, %p231
      %p233 = scmp.ne.s32.totalorder %s222, %s225
      %p234 = scmp.eq.s32.totalorder %s23, 7
      %p235 = por %p233, %p234
      %p236 = scmp.ne.s32.totalorder %s225, %s226
      %p237 = scmp.eq.s32.totalorder %s23, 0
      %p238 = por %p236, %p237
      %p239 = scmp.ne.s32.totalorder %s225, %s226
      %p240 = scmp.eq.s32.totalorder %s24, 7
      %p241 = por %p239, %p240
      %p243 = scmp.ne.s32.totalorder %s226, %s242
      %p244 = scmp.eq.s32.totalorder %s24, 0
      %p245 = por %p243, %p244
      %s247 = sadd.s32 %s246, 1
      %p250 = scmp.eq.s32.totalorder %s18, 7
      %p251 = scmp.ne.s32.totalorder %s246, %s248
      %p252 = scmp.eq.s32.totalorder %s18, 0
      %p253 = por %p251, %p252
      %p254 = scmp.ne.s32.totalorder %s246, %s248
      %p255 = scmp.eq.s32.totalorder %s23, 7
      %p256 = por %p254, %p255
      %p257 = scmp.ne.s32.totalorder %s248, %s249
      %p258 = scmp.eq.s32.totalorder %s23, 0
      %p259 = por %p257, %p258
      %p260 = scmp.ne.s32.totalorder %s248, %s249
      %p261 = scmp.eq.s32.totalorder %s24, 7
      %p262 = por %p260, %p261
      %p264 = scmp.ne.s32.totalorder %s249, %s263
      %p265 = scmp.eq.s32.totalorder %s24, 0
      %p266 = por %p264, %p265
      %s267 = ssub.s32 %s25, %s37
      %p268 = scmp.eq.s32.totalorder %s267, 0
      %s270 = sadd.s32 %s269, 1
      %s271 = scalar_select %p268, %s269, %s270
      %p274 = pneg %p268
      %p275 = scmp.eq.s32.totalorder %s18, 7
      %p276 = por %p274, %p275
      %p277 = scmp.ne.s32.totalorder %s269, %s272
      %p278 = scmp.eq.s32.totalorder %s18, 0
      %p279 = por %p277, %p278
      %p280 = scmp.ne.s32.totalorder %s269, %s272
      %p281 = scmp.eq.s32.totalorder %s23, 7
      %p282 = por %p280, %p281
      %p283 = scmp.ne.s32.totalorder %s272, %s273
      %p284 = scmp.eq.s32.totalorder %s23, 0
      %p285 = por %p283, %p284
      %p286 = scmp.ne.s32.totalorder %s272, %s273
      %p287 = scmp.eq.s32.totalorder %s24, 7
      %p288 = por %p286, %p287
      %p290 = scmp.ne.s32.totalorder %s273, %s289
      %p291 = scmp.eq.s32.totalorder %s24, 0
      %p292 = por %p290, %p291
      %p293 = scmp.le.s32.totalorder 1, %s18
      %p294 = scmp.lt.s32.totalorder %s18, 9
      %p295 = pnand %p293, %p294
      %p296 = pneg %p295
      // Predicated region
      $region9: #{tpu_custom_call.1} parent=5 // pred_check
        _
      $region10: #{tpu_custom_call.1} parent=5 // pred_check_branch
        %298 = sbr.rel (%p295) target = $region12
      $region11: #{tpu_custom_call.1} parent=5 // pred_region
        %s299 = ssub.s32 %s18, 1
        // Predicated region
        $region13: #{tpu_custom_call.1} parent=11 // pred_check
          %p300 = pneg %p259
        $region14: #{tpu_custom_call.1} parent=11 // pred_check_branch
          %302 = sbr.rel (%p300) target = $region16
        $region15: #{tpu_custom_call.1} parent=11 // pred_region
          _
        $region16: #{tpu_custom_call.1} parent=11 // pred_fallthru
          _
      $region12: #{tpu_custom_call.1} parent=5 // pred_fallthru
        _
      %p303 = scmp.lt.s32.totalorder %s18, 8
      // Predicated region
      $region17: #{tpu_custom_call.1} parent=5 // pred_check
        %p304 = pneg %p303
      $region18: #{tpu_custom_call.1} parent=5 // pred_check_branch
        %306 = sbr.rel (%p304) target = $region20
      $region19: #{tpu_custom_call.1} parent=5 // pred_region
        // Predicated region
        $region21: #{tpu_custom_call.1} parent=19 // pred_check
          %p307 = pneg %p50
        $region22: #{tpu_custom_call.1} parent=19 // pred_check_branch
          %309 = sbr.rel (%p307) target = $region24
        $region23: #{tpu_custom_call.1} parent=19 // pred_region
          %p310 = scmp.lt.s32.totalorder %s25, 1
          %s311 = scalar_select %p310, %s25, 1
          %s312 = smul.addr %s311, 8
          %s313 = scalar_lea.vmem %s0, %s312
        $region24: #{tpu_custom_call.1} parent=19 // pred_fallthru
          _
        // Predicated region
        $region25: #{tpu_custom_call.1} parent=19 // pred_check
          %p314 = pneg %p76
        $region26: #{tpu_custom_call.1} parent=19 // pred_check_branch
          %316 = sbr.rel (%p314) target = $region28
        $region27: #{tpu_custom_call.1} parent=19 // pred_region
          %p317 = scmp.lt.s32.totalorder %s26, 3
          %s318 = scalar_select %p317, %s26, 3
          %s319 = smul.addr %s318, 4
          %s320 = smul.addr %s319, 8
          %s321 = scalar_lea.vmem %s1, %s320
        $region28: #{tpu_custom_call.1} parent=19 // pred_fallthru
          _
        // Predicated region
        $region29: #{tpu_custom_call.1} parent=19 // pred_check
          %p322 = pneg %p102
        $region30: #{tpu_custom_call.1} parent=19 // pred_check_branch
          %324 = sbr.rel (%p322) target = $region32
        $region31: #{tpu_custom_call.1} parent=19 // pred_region
          %p325 = scmp.lt.s32.totalorder %s26, 3
          %s326 = scalar_select %p325, %s26, 3
          %s327 = scalar_lea.vmem %s2, %s326
        $region32: #{tpu_custom_call.1} parent=19 // pred_fallthru
          _
        // Predicated region
        $region33: #{tpu_custom_call.1} parent=19 // pred_check
          %p328 = pneg %p128
        $region34: #{tpu_custom_call.1} parent=19 // pred_check_branch
          %330 = sbr.rel (%p328) target = $region36
        $region35: #{tpu_custom_call.1} parent=19 // pred_region
          %p331 = scmp.lt.s32.totalorder %s26, 3
          %s332 = scalar_select %p331, %s26, 3
          %s333 = smul.addr %s332, 4
          %s334 = smul.addr %s333, 8
          %s335 = scalar_lea.vmem %s3, %s334
        $region36: #{tpu_custom_call.1} parent=19 // pred_fallthru
          _
        // Predicated region
        $region37: #{tpu_custom_call.1} parent=19 // pred_check
          %p336 = pneg %p154
        $region38: #{tpu_custom_call.1} parent=19 // pred_check_branch
          %338 = sbr.rel (%p336) target = $region40
        $region39: #{tpu_custom_call.1} parent=19 // pred_region
          %p339 = scmp.lt.s32.totalorder %s26, 3
          %s340 = scalar_select %p339, %s26, 3
          %s341 = scalar_lea.vmem %s4, %s340
        $region40: #{tpu_custom_call.1} parent=19 // pred_fallthru
          _
        // Predicated region
        $region41: #{tpu_custom_call.1} parent=19 // pred_check
          %p342 = pneg %p180
        $region42: #{tpu_custom_call.1} parent=19 // pred_check_branch
          %344 = sbr.rel (%p342) target = $region44
        $region43: #{tpu_custom_call.1} parent=19 // pred_region
          %p345 = scmp.lt.s32.totalorder %s26, 3
          %s346 = scalar_select %p345, %s26, 3
          %s347 = smul.addr %s346, 4
          %s348 = smul.addr %s347, 8
          %s349 = scalar_lea.vmem %s5, %s348
        $region44: #{tpu_custom_call.1} parent=19 // pred_fallthru
          _
        // Predicated region
        $region45: #{tpu_custom_call.1} parent=19 // pred_check
          %p350 = pneg %p206
        $region46: #{tpu_custom_call.1} parent=19 // pred_check_branch
          %352 = sbr.rel (%p350) target = $region48
        $region47: #{tpu_custom_call.1} parent=19 // pred_region
          %p353 = scmp.lt.s32.totalorder %s26, 3
          %s354 = scalar_select %p353, %s26, 3
          %s355 = scalar_lea.vmem %s6, %s354
        $region48: #{tpu_custom_call.1} parent=19 // pred_fallthru
          _
        // Predicated region
        $region49: #{tpu_custom_call.1} parent=19 // pred_check
          %p356 = pneg %p232
        $region50: #{tpu_custom_call.1} parent=19 // pred_check_branch
          %358 = sbr.rel (%p356) target = $region52
        $region51: #{tpu_custom_call.1} parent=19 // pred_region
          %p359 = scmp.lt.s32.totalorder %s26, 3
          %s360 = scalar_select %p359, %s26, 3
          %s361 = smul.addr %s360, 8
          %s362 = scalar_lea.vmem %s7, %s361
        $region52: #{tpu_custom_call.1} parent=19 // pred_fallthru
          _
      $region20: #{tpu_custom_call.1} parent=5 // pred_fallthru
        _
      %p363 = scmp.le.s32.totalorder 1, %s18
      %p364 = scmp.lt.s32.totalorder %s18, 9
      %p365 = pnand %p363, %p364
      %p366 = pneg %p365
      // Predicated region
      $region53: #{tpu_custom_call.1} parent=5 // pred_check
        _
      $region54: #{tpu_custom_call.1} parent=5 // pred_check_branch
        %368 = sbr.rel (%p365) target = $region56
      $region55: #{tpu_custom_call.1} parent=5 // pred_region
        %s369 = ssub.s32 %s18, 1
        %p370 = scmp.lt.s32.totalorder %s27, 1
        %s371 = scalar_select %p370, %s27, 1
        %s372 = smul.addr %s371, 8
        %s373 = scalar_lea.vmem %s0, %s372
        %p374 = pneg %p56
        %p375 = pneg %p53
        %p376 = scmp.lt.s32.totalorder %s28, 3
        %s377 = scalar_select %p376, %s28, 3
        %s378 = smul.addr %s377, 4
        %s379 = smul.addr %s378, 8
        %s380 = scalar_lea.vmem %s1, %s379
        %p381 = pneg %p82
        %p382 = pneg %p79
        %p383 = scmp.lt.s32.totalorder %s28, 3
        %s384 = scalar_select %p383, %s28, 3
        %s385 = scalar_lea.vmem %s2, %s384
        %p386 = pneg %p108
        %p387 = pneg %p105
        %p388 = scmp.lt.s32.totalorder %s28, 3
        %s389 = scalar_select %p388, %s28, 3
        %s390 = smul.addr %s389, 4
        %s391 = smul.addr %s390, 8
        %s392 = scalar_lea.vmem %s3, %s391
        %p393 = pneg %p134
        %p394 = pneg %p131
        %p395 = scmp.lt.s32.totalorder %s28, 3
        %s396 = scalar_select %p395, %s28, 3
        %s397 = scalar_lea.vmem %s4, %s396
        %p398 = pneg %p160
        %p399 = pneg %p157
        %p400 = scmp.lt.s32.totalorder %s28, 3
        %s401 = scalar_select %p400, %s28, 3
        %s402 = smul.addr %s401, 4
        %s403 = smul.addr %s402, 8
        %s404 = scalar_lea.vmem %s5, %s403
        %p405 = pneg %p186
        %p406 = pneg %p183
        %p407 = scmp.lt.s32.totalorder %s28, 3
        %s408 = scalar_select %p407, %s28, 3
        %s409 = scalar_lea.vmem %s6, %s408
        %p410 = pneg %p212
        %p411 = pneg %p209
        %p412 = scmp.lt.s32.totalorder %s28, 3
        %s413 = scalar_select %p412, %s28, 3
        %s414 = smul.addr %s413, 8
        %s415 = scalar_lea.vmem %s7, %s414
        %p416 = pneg %p238
        %p417 = pneg %p235
        %p418 = pneg %p259
        %p419 = pneg %p256
        %p420 = pneg %p285
        %p421 = pneg %p282
        %s422 = sand.u32 %s272, 1
        %s423 = scalar_lea.sflag [#allocation4], %s422
        %s424 = sand.u32 %s272, 1
        %s425 = smul.addr %s424, 8
        %s426 = scalar_lea.vmem [#allocation3], %s425
        %p427 = scmp.lt.s32.totalorder %s27, 1
        %s428 = scalar_select %p427, %s27, 1
        %s429 = smul.addr %s428, 8
        %s430 = scalar_lea.vmem %s0, %s429
        %p431 = scmp.lt.s32.totalorder %s28, 3
        %s432 = scalar_select %p431, %s28, 3
        %s433 = smul.addr %s432, 4
        %s434 = smul.addr %s433, 8
        %s435 = scalar_lea.vmem %s1, %s434
        %p436 = scmp.lt.s32.totalorder %s28, 3
        %s437 = scalar_select %p436, %s28, 3
        %s438 = scalar_lea.vmem %s2, %s437
        %p439 = scmp.lt.s32.totalorder %s28, 3
        %s440 = scalar_select %p439, %s28, 3
        %s441 = smul.addr %s440, 4
        %s442 = smul.addr %s441, 8
        %s443 = scalar_lea.vmem %s3, %s442
        %p444 = scmp.lt.s32.totalorder %s28, 3
        %s445 = scalar_select %p444, %s28, 3
        %s446 = scalar_lea.vmem %s4, %s445
        %p447 = scmp.lt.s32.totalorder %s28, 3
        %s448 = scalar_select %p447, %s28, 3
        %s449 = smul.addr %s448, 4
        %s450 = smul.addr %s449, 8
        %s451 = scalar_lea.vmem %s5, %s450
        %p452 = scmp.lt.s32.totalorder %s28, 3
        %s453 = scalar_select %p452, %s28, 3
        %s454 = scalar_lea.vmem %s6, %s453
        %p455 = scmp.lt.s32.totalorder %s28, 3
        %s456 = scalar_select %p455, %s28, 3
        %s457 = smul.addr %s456, 8
        %s458 = scalar_lea.vmem %s7, %s457
        %p459 = scmp.eq.s32.totalorder %s28, 0
        // Predicated region
        $region57: #{tpu_custom_call.1} parent=55 // pred_check
          %p460 = pneg %p459
        $region58: #{tpu_custom_call.1} parent=55 // pred_check_branch
          %462 = sbr.rel (%p460) target = $region60
        $region59: #{tpu_custom_call.1} parent=55 // pred_region
          %vm463 = vcmask 261120
          %464 = vst.msk [vmem:[#allocation2] sm:$0xff] %vm463, 0.0
        $region60: #{tpu_custom_call.1} parent=55 // pred_fallthru
          _
        %v465 = vld [vmem:[%s430] sm:$0xff]
        %v466 = vld [vmem:[%s435] sm:$0xff]
        %v467 = vld [vmem:[%s435 + $0x8] sm:$0xff]
        %v468 = vld [vmem:[%s435 + $0x10] sm:$0xff]
        %v469 = vld [vmem:[%s435 + $0x18] sm:$0xff]
        %v470 = vld [vmem:[%s438] sm:$0x1]
        %v472 = vperm.slane %v470, 0
        %vm474 = vcmask 261120
        %v476 = vsel %vm474, %v465, 0
        %478 = vmatpush.msra.mxu0 0.0
        %479 = vmatpush.msra.mxu0 0.0
        %480 = vmatpush.msra.mxu0 0.0
        %481 = vmatpush.msra.mxu0 0.0
        %482 = vmatpush.msra.mxu0 0.0
        %483 = vmatpush.msra.mxu0 0.0
        %484 = vmatpush.msra.mxu0 0.0
        %485 = vmatpush.msra.mxu0 0.0
        %486 = vmatpush.msra.mxu0 0.0
        %487 = vmatpush.msra.mxu0 0.0
        %488 = vmatpush.msra.mxu0 0.0
        %489 = vmatpush.msra.mxu0 0.0
        %490 = vmatpush.msra.mxu0 %v469
        %491 = vmatpush.msra.mxu0 %v468
        %492 = vmatpush.msra.mxu0 %v467
        %493 = vmatpush.msra.mxu0 %v466
        %494 = vmatmul.f32.gmra.mxu0 %v476
        %v495 = vpop.f32.mrf.mxu0
        %v496 = vadd.f32 %v472, %v495
        %497 = vdwg.mxu0
        %v498 = vld [vmem:[%s443] sm:$0xff]
        %v499 = vld [vmem:[%s443 + $0x8] sm:$0xff]
        %v500 = vld [vmem:[%s443 + $0x10] sm:$0xff]
        %v501 = vld [vmem:[%s443 + $0x18] sm:$0xff]
        %v502 = vld [vmem:[%s446] sm:$0x1]
        %v504 = vperm.slane %v502, 0
        %506 = vmatpush.msra.mxu0 0.0
        %507 = vmatpush.msra.mxu0 0.0
        %508 = vmatpush.msra.mxu0 0.0
        %509 = vmatpush.msra.mxu0 0.0
        %510 = vmatpush.msra.mxu0 0.0
        %511 = vmatpush.msra.mxu0 0.0
        %512 = vmatpush.msra.mxu0 0.0
        %513 = vmatpush.msra.mxu0 0.0
        %514 = vmatpush.msra.mxu0 0.0
        %515 = vmatpush.msra.mxu0 0.0
        %516 = vmatpush.msra.mxu0 0.0
        %517 = vmatpush.msra.mxu0 0.0
        %518 = vmatpush.msra.mxu0 %v501
        %519 = vmatpush.msra.mxu0 %v500
        %520 = vmatpush.msra.mxu0 %v499
        %521 = vmatpush.msra.mxu0 %v498
        %522 = vmatmul.f32.gmra.mxu0 %v476
        %v523 = vpop.f32.mrf.mxu0
        %v524 = vadd.f32 %v504, %v523
        %525 = vdwg.mxu0
        %v526 = vld [vmem:[%s451] sm:$0xff]
        %v527 = vld [vmem:[%s451 + $0x8] sm:$0xff]
        %v528 = vld [vmem:[%s451 + $0x10] sm:$0xff]
        %v529 = vld [vmem:[%s451 + $0x18] sm:$0xff]
        %v530 = vld [vmem:[%s454] sm:$0x1]
        %v532 = vperm.slane %v530, 0
        %534 = vmatpush.msra.mxu0 0.0
        %535 = vmatpush.msra.mxu0 0.0
        %536 = vmatpush.msra.mxu0 0.0
        %537 = vmatpush.msra.mxu0 0.0
        %538 = vmatpush.msra.mxu0 0.0
        %539 = vmatpush.msra.mxu0 0.0
        %540 = vmatpush.msra.mxu0 0.0
        %541 = vmatpush.msra.mxu0 0.0
        %542 = vmatpush.msra.mxu0 0.0
        %543 = vmatpush.msra.mxu0 0.0
        %544 = vmatpush.msra.mxu0 0.0
        %545 = vmatpush.msra.mxu0 0.0
        %546 = vmatpush.msra.mxu0 %v529
        %547 = vmatpush.msra.mxu0 %v528
        %548 = vmatpush.msra.mxu0 %v527
        %549 = vmatpush.msra.mxu0 %v526
        %550 = vmatmul.f32.gmra.mxu0 %v476
        %v551 = vpop.f32.mrf.mxu0
        %v552 = vadd.f32 %v532, %v551
        %553 = vdwg.mxu0
        %vm554 = vcmask 64512
        %v556 = vsel %vm554, %v496, 0
        %v559 = vsel %vm554, %v524, 0
        %561 = vmatpush.xpose.msra.mxu0 0.0
        %562 = vmatpush.xpose.msra.mxu0 0.0
        %563 = vmatpush.xpose.msra.mxu0 0.0
        %564 = vmatpush.xpose.msra.mxu0 0.0
        %565 = vmatpush.xpose.msra.mxu0 0.0
        %566 = vmatpush.xpose.msra.mxu0 0.0
        %567 = vmatpush.xpose.msra.mxu0 0.0
        %568 = vmatpush.xpose.msra.mxu0 0.0
        %569 = vmatpush.xpose.msra.mxu0 0.0
        %570 = vmatpush.xpose.msra.mxu0 0.0
        %571 = vmatpush.xpose.msra.mxu0 0.0
        %572 = vmatpush.xpose.msra.mxu0 0.0
        %573 = vmatpush.xpose.msra.mxu0 0.0
        %574 = vmatpush.xpose.msra.mxu0 0.0
        %575 = vmatpush.xpose.msra.mxu0 0.0
        %576 = vmatpush.xpose.msra.mxu0 %v559
        %577 = vmatmul.f32.gmra.mxu0 %v556
        %v578 = vpop.f32.mrf.mxu0
        %v579 = vadd.f32 0.0, %v578
        %580 = vdwg.mxu0
        %v581 = vmul.f32 %v579, 0.35355338
        %v582 = vlaneseq
        %v583 = vshrl.u32 %v582, 7
        %v584 = vlaneseq
        %v585 = vand.u32 %v584, 127
        %vm586 = vcmp.le.s32.totalorder %v585, %v583
        %v587 = vsel %vm586, %v581, -1e+30
        %v588 = vsel %vm554, %v587, -inf
        %589 = vmax.xlane.f32.xlu0 %v588
        %v590 = vpop.xlane.xlu0 %589
        %v591 = vsub.f32 %v587, %v590
        %v592 = vmul.f32 %v591, 1.442695
        %v593 = vpow.pop %v592
        %v594 = vsel %vm554, %v593, 0.0
        %595 = vadd.xlane.f32.xlu0 %v594
        %v596 = vpop.xlane.xlu0 %595
        %v597 = vrcp.pop %v596
        %v598 = vmul.f32 %v596, %v597
        %v599 = vsub.f32 1.0, %v598
        %v600 = vmul.f32 %v597, %v599
        %v601 = vadd.f32 %v597, %v600
        %vm602 = vweird.f32 %v596
        %vm603 = vweird.f32 %v597
        %vm604 = vmor %vm602, %vm603
        %v605 = vsel %vm604, %v597, %v601
        %v606 = vand.u32 2147483647, %v596
        %vm607 = vcmp.eq.f32.partialorder %v606, 8.507059e+37
        %v608 = vand.u32 %v596, 2147483648
        %v609 = vor.u32 1.1754944e-38, %v608
        %v610 = vsel %vm607, %v609, %v605
        %v611 = vmul.f32 %v593, %v610
        %v613 = vsel %vm554, %v611, 0
        %615 = vmatpush.msra.mxu0 0.0
        %616 = vmatpush.msra.mxu0 0.0
        %617 = vmatpush.msra.mxu0 0.0
        %618 = vmatpush.msra.mxu0 0.0
        %619 = vmatpush.msra.mxu0 0.0
        %620 = vmatpush.msra.mxu0 0.0
        %621 = vmatpush.msra.mxu0 0.0
        %622 = vmatpush.msra.mxu0 0.0
        %623 = vmatpush.msra.mxu0 0.0
        %624 = vmatpush.msra.mxu0 0.0
        %625 = vmatpush.msra.mxu0 0.0
        %626 = vmatpush.msra.mxu0 0.0
        %627 = vmatpush.msra.mxu0 0.0
        %628 = vmatpush.msra.mxu0 0.0
        %629 = vmatpush.msra.mxu0 0.0
        %630 = vmatpush.msra.mxu0 %v552
        %631 = vmatmul.f32.gmra.mxu0 %v613
        %v632 = vpop.f32.mrf.mxu0
        %v633 = vadd.f32 0.0, %v632
        %634 = vdwg.mxu0
        %v635 = vld [vmem:[#allocation2] sm:$0xff]
        %v636 = vld [vmem:[%s458] sm:$0xff]
        %v638 = vsel %vm554, %v633, 0
        %640 = vmatpush.msra.mxu0 0.0
        %641 = vmatpush.msra.mxu0 0.0
        %642 = vmatpush.msra.mxu0 0.0
        %643 = vmatpush.msra.mxu0 0.0
        %644 = vmatpush.msra.mxu0 0.0
        %645 = vmatpush.msra.mxu0 0.0
        %646 = vmatpush.msra.mxu0 0.0
        %647 = vmatpush.msra.mxu0 0.0
        %648 = vmatpush.msra.mxu0 0.0
        %649 = vmatpush.msra.mxu0 0.0
        %650 = vmatpush.msra.mxu0 0.0
        %651 = vmatpush.msra.mxu0 0.0
        %652 = vmatpush.msra.mxu0 0.0
        %653 = vmatpush.msra.mxu0 0.0
        %654 = vmatpush.msra.mxu0 0.0
        %655 = vmatpush.msra.mxu0 %v636
        %656 = vmatmul.f32.gmra.mxu0 %v638
        %v657 = vpop.f32.mrf.mxu0
        %v658 = vadd.f32 0.0, %v657
        %659 = vdwg.mxu0
        %v660 = vadd.f32 %v635, %v658
        %661 = vst.msk [vmem:[#allocation2] sm:$0xff] %vm474, %v660
        %p662 = scmp.eq.s32.totalorder %s28, 3
        // Predicated region
        $region61: #{tpu_custom_call.1} parent=55 // pred_check
          %p663 = pneg %p662
        $region62: #{tpu_custom_call.1} parent=55 // pred_check_branch
          %665 = sbr.rel (%p663) target = $region64
        $region63: #{tpu_custom_call.1} parent=55 // pred_region
          %v666 = vld [vmem:[#allocation2] sm:$0xff]
          %v667 = vld [vmem:[%s8] sm:$0x1]
          %v669 = vperm.slane %v667, 0
          %v671 = vadd.f32 %v666, %v669
          %672 = vst.msk [vmem:[%s426] sm:$0xff] %vm474, %v671
        $region64: #{tpu_custom_call.1} parent=55 // pred_fallthru
          _
        %s673 = sand.u32 %s272, 1
        %s674 = scalar_lea.sflag [#allocation4], %s673
        %s675 = sand.u32 %s272, 1
        %s676 = smul.addr %s675, 8
        %s677 = scalar_lea.vmem [#allocation3], %s676
        // Predicated region
        $region65: #{tpu_custom_call.1} parent=55 // pred_check
          %p678 = pneg %p282
        $region66: #{tpu_custom_call.1} parent=55 // pred_check_branch
          %680 = sbr.rel (%p678) target = $region68
        $region67: #{tpu_custom_call.1} parent=55 // pred_region
          %682 = vsyncadd %s674, 0
          %s683 = smul.addr %s27, 8
          %s684 = scalar_lea.hbm %s9, %s683
          %s686 = sshll.u32 %s677, 4
          %s687 = int_to_ptr.vmem [resolvable:$true] %s686
          %s688 = sshll.u32 %s684, 4
          %s689 = int_to_ptr.hbm [resolvable:$true] %s688
          %691 = dma.vmem_to_hbm [thread:$0]  %s687, 128, %s689, %s674
        $region68: #{tpu_custom_call.1} parent=55 // pred_fallthru
          _
      $region56: #{tpu_custom_call.1} parent=5 // pred_fallthru
        _
      %p692 = scmp.le.s32.totalorder 2, %s18
      // Predicated region
      $region69: #{tpu_custom_call.1} parent=5 // pred_check
        %p693 = pneg %p692
      $region70: #{tpu_custom_call.1} parent=5 // pred_check_branch
        %695 = sbr.rel (%p693) target = $region72
      $region71: #{tpu_custom_call.1} parent=5 // pred_region
        %s696 = ssub.s32 %s18, 2
        // Predicated region
        $region73: #{tpu_custom_call.1} parent=71 // pred_check
          %p697 = pneg %p288
        $region74: #{tpu_custom_call.1} parent=71 // pred_check_branch
          %699 = sbr.rel (%p697) target = $region76
        $region75: #{tpu_custom_call.1} parent=71 // pred_region
          %s700 = sand.u32 %s273, 1
          %s701 = scalar_lea.sflag [#allocation4], %s700
          %s702 = sand.u32 %s273, 1
          %s703 = smul.addr %s702, 8
          %s704 = scalar_lea.vmem [#allocation3], %s703
          %706 = dma.done %s701, 128
        $region76: #{tpu_custom_call.1} parent=71 // pred_fallthru
          _
      $region72: #{tpu_custom_call.1} parent=5 // pred_fallthru
        _
    $region6: #{tpu_custom_call.1} parent=1 // loop_footer
      %s22 = sadd.s32 1, %s18
    $region7: #{tpu_custom_call.1} parent=1 // loop_footer_branch
      %17 = sbr.rel target = $region3
    $region8: #{tpu_custom_call.1} parent=1 // loop_exit
      _
    %707 = vsyncpa [#allocation4], 1
    %s708 = scalar_lea.sflag [#allocation4], 1
    %709 = vsyncpa %s708, 1

</llo_original>
